<compile_context>
chip_gen: v7x
topology: tpu7x:2x2x1
jax: 0.10.0
libtpu: 0.0.40
codegen_flags: <defaults>
</compile_context>

<pallas_src>
import jax
import jax.numpy as jnp
from jax.experimental import pallas as pl
from jax.experimental.pallas import tpu as pltpu


# ---------------------------------------------------------------------------
# Kernel 1: h2 = relu(relu(x @ w1 + b1) @ w2 + b2)    (tiny, run once, bf16 out)
# ---------------------------------------------------------------------------
def head_kernel(x_ref, w1_ref, b1_ref, w2_ref, b2_ref, h2_ref):
    h1 = jnp.dot(x_ref[...], w1_ref[...], preferred_element_type=jnp.float32)
    h1 = jnp.maximum(h1 + b1_ref[...], 0.0)
    h2 = jnp.dot(h1, w2_ref[...], preferred_element_type=jnp.float32)
    h2_ref[...] = jnp.maximum(h2 + b2_ref[...], 0.0).astype(h2_ref.dtype)


# ---------------------------------------------------------------------------
# Kernel 2: out_tile = sigmoid(h2 @ w3_tile + b3_tile)
#           bf16 x bf16 MXU matmul, f32 accumulate, bf16 store.
# ---------------------------------------------------------------------------
def fc3_kernel(h2_ref, w3_ref, b3_ref, o_ref):
    z = jnp.dot(h2_ref[...], w3_ref[...], preferred_element_type=jnp.float32)
    o_ref[...] = jax.nn.sigmoid(z + b3_ref[...]).astype(o_ref.dtype)


def image_generator_forward(x, params):
    """x: [B, input_dim] float32.  B should be a multiple of 8 so output
    stores are unmasked full-sublane vst (B=8 in the demo; smaller B still
    works, just with masked stores).

    Returns [B, padded_output_dim] bfloat16.  The logical image is the first
    params['output_dim'] columns; the padded tail (sigmoid(0) = 0.5) is left
    in place so no HBM traffic is spent cropping -- crop lazily where the
    image is reshaped/consumed."""
    w1, b1, w2, b2, w3, b3 = (params["w1"], params["b1"], params["w2"],
                              params["b2"], params["w3"], params["b3"])
    tn = params["tn"]
    B = x.shape[0]
    H2 = w2.shape[1]
    D_pad = w3.shape[1]
    assert tn % 128 == 0, "column tile must be lane-aligned (multiple of 128)"
    assert D_pad % tn == 0, "w3 must be pre-padded at init to a multiple of tn"

    # --- stage 1: hidden activations, computed once per forward -------------
    h2 = pl.pallas_call(
        head_kernel,
        out_shape=jax.ShapeDtypeStruct((B, H2), jnp.bfloat16),
    )(x, w1, b1, w2, b2)

    # --- stage 2: fc3 + sigmoid, column-tiled bf16 weight streaming ---------
    out = pl.pallas_call(
        fc3_kernel,
        out_shape=jax.ShapeDtypeStruct((B, D_pad), jnp.bfloat16),
        grid_spec=pltpu.PrefetchScalarGridSpec(
            num_scalar_prefetch=0,
            grid=(D_pad // tn,),
            in_specs=[
                pl.BlockSpec((B, H2), lambda j: (0, 0)),    # h2 (small, resident)
                pl.BlockSpec((H2, tn), lambda j: (0, j)),   # w3 column tile (streamed)
                pl.BlockSpec((1, tn), lambda j: (0, j)),    # b3 column tile
            ],
            out_specs=pl.BlockSpec((B, tn), lambda j: (0, j)),
        ),
        compiler_params=pltpu.CompilerParams(
            dimension_semantics=("parallel",)),
    )(h2, w3, b3)
    return out


def init_params(key, input_dim, h1, h2, output_dim, *, tn=8192):
    """PyTorch nn.Linear-style init: U(-1/sqrt(fan_in), 1/sqrt(fan_in)),
    weights stored (in_features, out_features).

    w3/b3 are padded HERE, once, to a multiple of the fc3 column tile `tn`
    (padded columns are zero -> sigmoid(0)=0.5, cropped by the consumer), so
    the forward never re-pads the large weight.  w3 is stored in bfloat16 to
    halve the HBM streaming cost of the only large tensor."""
    assert tn % 128 == 0

    def linear(k, fan_in, fan_out, w_dtype=jnp.float32):
        kw, kb = jax.random.split(k)
        bound = 1.0 / jnp.sqrt(fan_in)
        w = jax.random.uniform(kw, (fan_in, fan_out), jnp.float32, -bound, bound)
        b = jax.random.uniform(kb, (1, fan_out), jnp.float32, -bound, bound)
        return w.astype(w_dtype), b

    k1, k2, k3 = jax.random.split(key, 3)
    w1, b1 = linear(k1, input_dim, h1)
    w2, b2 = linear(k2, h1, h2)
    w3, b3 = linear(k3, h2, output_dim, w_dtype=jnp.bfloat16)

    d_pad = pl.cdiv(output_dim, tn) * tn
    if d_pad != output_dim:
        w3 = jnp.pad(w3, ((0, 0), (0, d_pad - output_dim)))
        b3 = jnp.pad(b3, ((0, 0), (0, d_pad - output_dim)))

    return dict(w1=w1, b1=b1, w2=w2, b2=b2, w3=w3, b3=b3,
                tn=tn, output_dim=output_dim)


def reference_forward(x, p):
    """Pure-JAX reference in matching precision (bf16 h2, bf16 w3, f32 acc)."""
    d = p["output_dim"]
    h1 = jnp.maximum(x @ p["w1"] + p["b1"], 0.0)
    h2 = jnp.maximum(h1 @ p["w2"] + p["b2"], 0.0).astype(jnp.bfloat16)
    z = jnp.dot(h2, p["w3"][:, :d], preferred_element_type=jnp.float32)
    return jax.nn.sigmoid(z + p["b3"][:, :d])


if __name__ == "__main__":
    # Small shapes consistent with the module: state_dim=10 input,
    # output = HEIGHT*WIDTH*3 with a small 16x16 "image" -> 768 columns.
    # Batch 8 fills the sublane dimension (unmasked output stores).
    BATCH = 8
    INPUT_DIM = 10
    H1, H2 = 128, 256
    HEIGHT, WIDTH = 16, 16
    OUTPUT_DIM = HEIGHT * WIDTH * 3   # 768

    key = jax.random.PRNGKey(0)
    k_x, k_p = jax.random.split(key)
    x = jax.random.normal(k_x, (BATCH, INPUT_DIM), jnp.float32)

    # tn=512 here so the small demo output (768 cols) exercises the
    # multi-tile + pre-padded-final-tile path; the real 500x500x3 case should
    # use the default tn=8192 (sweep 4096/8192/16384).
    params = init_params(k_p, INPUT_DIM, H1, H2, OUTPUT_DIM, tn=512)

    out_padded = image_generator_forward(x, params)
    out_padded = jax.block_until_ready(out_padded)

    # Lazy crop at the consumer (demo only; no crop inside the forward).
    out = out_padded[:, :OUTPUT_DIM].astype(jnp.float32)
    ref = reference_forward(x, params)

    assert out_padded.shape == (BATCH, params["w3"].shape[1])
    assert out.shape == (BATCH, OUTPUT_DIM)
    # bf16 output quantization + MXU-vs-XLA accumulation order -> loose tol.
    assert jnp.allclose(out, ref, atol=1e-2, rtol=1e-2), \
        "mismatch vs pure-JAX reference"

    print("KERNEL_OK")
</pallas_src>

<mosaic_0001>
module attributes {stable_mosaic.version = 11 : i64} {
  func.func @head_kernel(%arg0: memref<8x10xf32, #tpu.memory_space<vmem>>, %arg1: memref<10x128xf32, #tpu.memory_space<vmem>>, %arg2: memref<1x128xf32, #tpu.memory_space<vmem>>, %arg3: memref<128x256xf32, #tpu.memory_space<vmem>>, %arg4: memref<1x256xf32, #tpu.memory_space<vmem>>, %arg5: memref<8x256xbf16, #tpu.memory_space<vmem>>) attributes {dimension_semantics = [], scalar_prefetch = 0 : i64, scratch_operands = 0 : i64, tpu.core_type = #tpu.core_type<tc>} {
    %c0 = arith.constant 0 : index
    %c0_0 = arith.constant 0 : index
    %0 = vector.load %arg0[%c0, %c0_0] : memref<8x10xf32, #tpu.memory_space<vmem>>, vector<8x10xf32>
    %c0_1 = arith.constant 0 : index
    %c0_2 = arith.constant 0 : index
    %1 = vector.load %arg1[%c0_1, %c0_2] : memref<10x128xf32, #tpu.memory_space<vmem>>, vector<10x128xf32>
    %cst = arith.constant dense<0.000000e+00> : vector<8x128xf32>
    %2 = tpu.matmul %0, %1, %cst {dimension_numbers = #tpu.dot_dimension_numbers<[1], [0], [0], [1], [0, 0, 1, 1], [], []>} : vector<8x10xf32>, vector<10x128xf32>, vector<8x128xf32> -> vector<8x128xf32>
    %c0_3 = arith.constant 0 : index
    %c0_4 = arith.constant 0 : index
    %3 = vector.load %arg2[%c0_3, %c0_4] : memref<1x128xf32, #tpu.memory_space<vmem>>, vector<1x128xf32>
    %4 = vector.broadcast %3 : vector<1x128xf32> to vector<8x128xf32>
    %5 = arith.addf %2, %4 : vector<8x128xf32>
    %cst_5 = arith.constant 0.000000e+00 : f32
    %6 = vector.broadcast %cst_5 : f32 to vector<8x128xf32>
    %7 = arith.maximumf %5, %6 : vector<8x128xf32>
    %c0_6 = arith.constant 0 : index
    %c0_7 = arith.constant 0 : index
    %8 = vector.load %arg3[%c0_6, %c0_7] : memref<128x256xf32, #tpu.memory_space<vmem>>, vector<128x256xf32>
    %cst_8 = arith.constant dense<0.000000e+00> : vector<8x256xf32>
    %9 = tpu.matmul %7, %8, %cst_8 {dimension_numbers = #tpu.dot_dimension_numbers<[1], [0], [0], [1], [0, 0, 1, 1], [], []>} : vector<8x128xf32>, vector<128x256xf32>, vector<8x256xf32> -> vector<8x256xf32>
    %c0_9 = arith.constant 0 : index
    %c0_10 = arith.constant 0 : index
    %10 = vector.load %arg4[%c0_9, %c0_10] : memref<1x256xf32, #tpu.memory_space<vmem>>, vector<1x256xf32>
    %11 = vector.broadcast %10 : vector<1x256xf32> to vector<8x256xf32>
    %12 = arith.addf %9, %11 : vector<8x256xf32>
    %cst_11 = arith.constant 0.000000e+00 : f32
    %13 = vector.broadcast %cst_11 : f32 to vector<8x256xf32>
    %14 = arith.maximumf %12, %13 : vector<8x256xf32>
    %15 = arith.truncf %14 : vector<8x256xf32> to vector<8x256xbf16>
    %c0_12 = arith.constant 0 : index
    %c0_13 = arith.constant 0 : index
    %16 = vector.load %arg5[%c0_12, %c0_13] : memref<8x256xbf16, #tpu.memory_space<vmem>>, vector<8x256xbf16>
    tpu.vector_store %arg5[%c0_12, %c0_13], %15 {strides = array<i32>} : memref<8x256xbf16, #tpu.memory_space<vmem>>, vector<8x256xbf16>,
    return
  }
}

</mosaic_0001>

<llo_original>
// kernel: tpu_custom_call.1
$region0: #{tpu_custom_call.1}
  #allocation0 [shape = 'u32[]', space=smem, size = 0x4, offset = 0x4, fixed_abs, tag = 'smem constant byte address 0x4 - core index']
  #allocation1 [shape = 'u32[144,128]{1,0:T(1,128)}', space=vmem, size = 0x12000, scoped, tag = 'internal scratch']
  %s0 = inlined_call_operand.hbm [shape: f32[8,10], index: 0, kind: input, shape index: {}]
  %s1 = inlined_call_operand.hbm [shape: f32[10,128], index: 1, kind: input, shape index: {}]
  %s2 = inlined_call_operand.vmem [shape: f32[1,128], index: 2, kind: input, shape index: {}]
  %s3 = inlined_call_operand.hbm [shape: f32[128,256], index: 3, kind: input, shape index: {}]
  %s4 = inlined_call_operand.vmem [shape: f32[1,256], index: 4, kind: input, shape index: {}]
  %s5 = inlined_call_operand.hbm [shape: bf16[8,256], index: 5, kind: output, shape index: {}]
  %s6 = sld [smem:[#allocation0]]
  $region42: #{tpu_custom_call.1} parent=0
    _
  %s8 = ssub.s32 1, %s6
  %s9 = scalar_select 0, %s8, %s6
  $region1: #{tpu_custom_call.1} parent=0
    #allocation2 [shape = 'u8[4096]{0}', space=vmem, size = 0x1000, scoped, tag = 'input window, operand 0, single buffered']
    #allocation3 [shape = 's32[1]{0}', space=sflag, size = 0x4, scoped, tag = 'scoped memory for tpu_custom_call.1']
    #allocation4 [shape = 's32[1]{0}', space=sflag, size = 0x4, scoped, tag = 'scoped memory for tpu_custom_call.1']
    #allocation5 [shape = 'u8[8192]{0}', space=vmem, size = 0x2000, scoped, tag = 'input window, operand 1, single buffered']
    #allocation6 [shape = 's32[1]{0}', space=sflag, size = 0x4, scoped, tag = 'scoped memory for tpu_custom_call.1']
    #allocation7 [shape = 'u8[131072]{0}', space=vmem, size = 0x20000, scoped, tag = 'input window, operand 3, single buffered']
    #allocation8 [shape = 'u8[4096]{0}', space=vmem, size = 0x1000, scoped, tag = 'output window, operand 0, single buffered']
    %10 = vsyncpa [#allocation3], 0
    %11 = vsyncpa [#allocation6], 0
    %12 = vsyncpa [#allocation4], 0
    // Predicated region
    $region2: #{tpu_custom_call.1} parent=1 // pred_check
      _
    $region3: #{tpu_custom_call.1} parent=1 // pred_check_branch
      %14 = sbr.rel (0) target = $region5
    $region4: #{tpu_custom_call.1} parent=1 // pred_region
      %s16 = ssub.s32 128, 128
      %17 = vsyncadd [#allocation3], %s16
      %s19 = sshll.u32 [#allocation2], 4
      %s20 = int_to_ptr.vmem [resolvable:$true] %s19
      %22 = dma.hbm_to_vmem [thread:$0]  %s0, 128, %s20, [#allocation3]
    $region5: #{tpu_custom_call.1} parent=1 // pred_fallthru
      _
    // Predicated region
    $region6: #{tpu_custom_call.1} parent=1 // pred_check
      _
    $region7: #{tpu_custom_call.1} parent=1 // pred_check_branch
      %24 = sbr.rel (0) target = $region9
    $region8: #{tpu_custom_call.1} parent=1 // pred_region
      %s26 = ssub.s32 256, 256
      %27 = vsyncadd [#allocation6], %s26
      %s28 = sshll.u32 [#allocation5], 4
      %s29 = int_to_ptr.vmem [resolvable:$true] %s28
      %34 = dma.hbm_to_vmem [thread:$0]  %s1, 256, %s29, [#allocation6], 128, 128, 8
    $region9: #{tpu_custom_call.1} parent=1 // pred_fallthru
      _
    // Predicated region
    $region10: #{tpu_custom_call.1} parent=1 // pred_check
      _
    $region11: #{tpu_custom_call.1} parent=1 // pred_check_branch
      %36 = sbr.rel (0) target = $region13
    $region12: #{tpu_custom_call.1} parent=1 // pred_region
      _
    $region13: #{tpu_custom_call.1} parent=1 // pred_fallthru
      _
    // Predicated region
    $region14: #{tpu_custom_call.1} parent=1 // pred_check
      _
    $region15: #{tpu_custom_call.1} parent=1 // pred_check_branch
      %38 = sbr.rel (0) target = $region17
    $region16: #{tpu_custom_call.1} parent=1 // pred_region
      %s40 = ssub.s32 4096, 4096
      %41 = vsyncadd [#allocation6], %s40
      %s42 = sshll.u32 [#allocation7], 4
      %s43 = int_to_ptr.vmem [resolvable:$true] %s42
      %48 = dma.hbm_to_vmem [thread:$0]  %s3, 4096, %s43, [#allocation6], 256, 256, 16
    $region17: #{tpu_custom_call.1} parent=1 // pred_fallthru
      _
    // Predicated region
    $region18: #{tpu_custom_call.1} parent=1 // pred_check
      _
    $region19: #{tpu_custom_call.1} parent=1 // pred_check_branch
      %50 = sbr.rel (0) target = $region21
    $region20: #{tpu_custom_call.1} parent=1 // pred_region
      _
    $region21: #{tpu_custom_call.1} parent=1 // pred_fallthru
      _
    // Predicated region
    $region22: #{tpu_custom_call.1} parent=1 // pred_check
      _
    $region23: #{tpu_custom_call.1} parent=1 // pred_check_branch
      %52 = sbr.rel (0) target = $region25
    $region24: #{tpu_custom_call.1} parent=1 // pred_region
      %53 = dma.done [#allocation3], 128
    $region25: #{tpu_custom_call.1} parent=1 // pred_fallthru
      _
    // Predicated region
    $region26: #{tpu_custom_call.1} parent=1 // pred_check
      _
    $region27: #{tpu_custom_call.1} parent=1 // pred_check_branch
      %55 = sbr.rel (0) target = $region29
    $region28: #{tpu_custom_call.1} parent=1 // pred_region
      %56 = dma.done [#allocation6], 256
    $region29: #{tpu_custom_call.1} parent=1 // pred_fallthru
      _
    // Predicated region
    $region30: #{tpu_custom_call.1} parent=1 // pred_check
      _
    $region31: #{tpu_custom_call.1} parent=1 // pred_check_branch
      %58 = sbr.rel (0) target = $region33
    $region32: #{tpu_custom_call.1} parent=1 // pred_region
      %59 = dma.done [#allocation6], 4096
    $region33: #{tpu_custom_call.1} parent=1 // pred_fallthru
      _
    %v60 = vld [vmem:[#allocation2] sm:$0xff]
    %v61 = vld [vmem:[#allocation5] sm:$0xff]
    %v62 = vld [vmem:[#allocation5 + $0x8] sm:$0x3]
    %v63 = vld [vmem:[%s2] sm:$0x1]
    %v65 = vlaneseq
    %v66 = vshrl.u32 %v65, 7
    %v67 = vsub.s32 0, %v66
    %v68 = vrot.slane %v63, %v67
    %vm70 = vcmask 80896
    %v72 = vsel %vm70, %v60, 0
    %vm74 = vcmask 1041408
    %v76 = vsel %vm74, %v62, 0
    %78 = vmatprep.subr.mxu0 0.0
    %79 = vmatpush1.msra.mxu0 %v61
    %80 = vmatprep.subr.mxu0 0.0
    %81 = vmatpush1.msra.mxu0 %v76
    %82 = vmatprep.subr.mxu0 0.0
    %83 = vmatpush1.msra.mxu0 0.0
    %84 = vmatprep.subr.mxu0 0.0
    %85 = vmatpush1.msra.mxu0 0.0
    %86 = vmatprep.subr.mxu0 0.0
    %87 = vmatpush1.msra.mxu0 0.0
    %88 = vmatprep.subr.mxu0 0.0
    %89 = vmatpush1.msra.mxu0 0.0
    %90 = vmatprep.subr.mxu0 0.0
    %91 = vmatpush1.msra.mxu0 0.0
    %92 = vmatprep.subr.mxu0 0.0
    %93 = vmatpush1.msra.mxu0 0.0
    %94 = vmatprep.subr.mxu0 0.0
    %95 = vmatpush1.msra.mxu0 0.0
    %96 = vmatprep.subr.mxu0 0.0
    %97 = vmatpush1.msra.mxu0 0.0
    %98 = vmatprep.subr.mxu0 0.0
    %99 = vmatpush1.msra.mxu0 0.0
    %100 = vmatprep.subr.mxu0 0.0
    %101 = vmatpush1.msra.mxu0 0.0
    %102 = vmatprep.subr.mxu0 0.0
    %103 = vmatpush1.msra.mxu0 0.0
    %104 = vmatprep.subr.mxu0 0.0
    %105 = vmatpush1.msra.mxu0 0.0
    %106 = vmatprep.subr.mxu0 0.0
    %107 = vmatpush1.msra.mxu0 0.0
    %108 = vmatprep.subr.mxu0 0.0
    %109 = vmatpush1.msra.mxu0 0.0
    %110 = vmatprep.subr.mxu0 0.0
    %111 = vmatpush1.msra.mxu0 0.0
    %112 = vmatprep.subr.mxu0 0.0
    %113 = vmatpush1.msra.mxu0 0.0
    %114 = vmatprep.subr.mxu0 0.0
    %115 = vmatpush1.msra.mxu0 0.0
    %116 = vmatprep.subr.mxu0 0.0
    %117 = vmatpush1.msra.mxu0 0.0
    %118 = vmatprep.subr.mxu0 0.0
    %119 = vmatpush1.msra.mxu0 0.0
    %120 = vmatprep.subr.mxu0 0.0
    %121 = vmatpush1.msra.mxu0 0.0
    %122 = vmatprep.subr.mxu0 0.0
    %123 = vmatpush1.msra.mxu0 0.0
    %124 = vmatprep.subr.mxu0 0.0
    %125 = vmatpush1.msra.mxu0 0.0
    %126 = vmatprep.subr.mxu0 0.0
    %127 = vmatpush1.msra.mxu0 0.0
    %128 = vmatprep.subr.mxu0 0.0
    %129 = vmatpush1.msra.mxu0 0.0
    %130 = vmatprep.subr.mxu0 0.0
    %131 = vmatpush1.msra.mxu0 0.0
    %132 = vmatprep.subr.mxu0 0.0
    %133 = vmatpush1.msra.mxu0 0.0
    %134 = vmatprep.subr.mxu0 0.0
    %135 = vmatpush1.msra.mxu0 0.0
    %136 = vmatprep.subr.mxu0 0.0
    %137 = vmatpush1.msra.mxu0 0.0
    %138 = vmatprep.subr.mxu0 0.0
    %139 = vmatpush1.msra.mxu0 0.0
    %140 = vmatprep.subr.mxu0 0.0
    %141 = vmatpush1.msra.mxu0 0.0
    %142 = vmatprep.mubr.f32.mxu0 0.0
    %143 = vmatmul.mubr.f32.gmra.mrb[0].mxu0 %v72
    %v144 = vpop.f32.mrb[0].mxu0
    %v145 = vadd.f32 %v68, %v144
    %v146 = vpop.f32.mrb[0].mxu0
    %147 = vdwg.mxu0
    %v148 = vmax.f32 %v145, 0.0
    %v149 = vld [vmem:[#allocation7] sm:$0xff]
    %v150 = vld [vmem:[#allocation7 + $0x8] sm:$0xff]
    %v151 = vld [vmem:[#allocation7 + $0x10] sm:$0xff]
    %v152 = vld [vmem:[#allocation7 + $0x18] sm:$0xff]
    %v153 = vld [vmem:[#allocation7 + $0x20] sm:$0xff]
    %v154 = vld [vmem:[#allocation7 + $0x28] sm:$0xff]
    %v155 = vld [vmem:[#allocation7 + $0x30] sm:$0xff]
    %v156 = vld [vmem:[#allocation7 + $0x38] sm:$0xff]
    %v157 = vld [vmem:[#allocation7 + $0x40] sm:$0xff]
    %v158 = vld [vmem:[#allocation7 + $0x48] sm:$0xff]
    %v159 = vld [vmem:[#allocation7 + $0x50] sm:$0xff]
    %v160 = vld [vmem:[#allocation7 + $0x58] sm:$0xff]
    %v161 = vld [vmem:[#allocation7 + $0x60] sm:$0xff]
    %v162 = vld [vmem:[#allocation7 + $0x68] sm:$0xff]
    %v163 = vld [vmem:[#allocation7 + $0x70] sm:$0xff]
    %v164 = vld [vmem:[#allocation7 + $0x78] sm:$0xff]
    %v165 = vld [vmem:[#allocation7 + $0x80] sm:$0xff]
    %v166 = vld [vmem:[#allocation7 + $0x88] sm:$0xff]
    %v167 = vld [vmem:[#allocation7 + $0x90] sm:$0xff]
    %v168 = vld [vmem:[#allocation7 + $0x98] sm:$0xff]
    %v169 = vld [vmem:[#allocation7 + $0xa0] sm:$0xff]
    %v170 = vld [vmem:[#allocation7 + $0xa8] sm:$0xff]
    %v171 = vld [vmem:[#allocation7 + $0xb0] sm:$0xff]
    %v172 = vld [vmem:[#allocation7 + $0xb8] sm:$0xff]
    %v173 = vld [vmem:[#allocation7 + $0xc0] sm:$0xff]
    %v174 = vld [vmem:[#allocation7 + $0xc8] sm:$0xff]
    %v175 = vld [vmem:[#allocation7 + $0xd0] sm:$0xff]
    %v176 = vld [vmem:[#allocation7 + $0xd8] sm:$0xff]
    %v177 = vld [vmem:[#allocation7 + $0xe0] sm:$0xff]
    %v178 = vld [vmem:[#allocation7 + $0xe8] sm:$0xff]
    %v179 = vld [vmem:[#allocation7 + $0xf0] sm:$0xff]
    %v180 = vld [vmem:[#allocation7 + $0xf8] sm:$0xff]
    %v181 = vld [vmem:[%s4] sm:$0x3]
    %v183 = vlaneseq
    %v184 = vshrl.u32 %v183, 7
    %v185 = vsub.s32 0, %v184
    %v186 = vrot.slane %v181, %v185
    %v187 = vlaneseq
    %v188 = vshrl.u32 %v187, 7
    %v189 = vsub.s32 1, %v188
    %v190 = vrot.slane %v181, %v189
    %193 = vmatprep.subr.mxu0 %v150
    %194 = vmatpush1.msra.mxu0 %v149
    %195 = vmatprep.subr.mxu0 %v152
    %196 = vmatpush1.msra.mxu0 %v151
    %197 = vmatprep.subr.mxu0 %v154
    %198 = vmatpush1.msra.mxu0 %v153
    %199 = vmatprep.subr.mxu0 %v156
    %200 = vmatpush1.msra.mxu0 %v155
    %201 = vmatprep.subr.mxu0 %v158
    %202 = vmatpush1.msra.mxu0 %v157
    %203 = vmatprep.subr.mxu0 %v160
    %204 = vmatpush1.msra.mxu0 %v159
    %205 = vmatprep.subr.mxu0 %v162
    %206 = vmatpush1.msra.mxu0 %v161
    %207 = vmatprep.subr.mxu0 %v164
    %208 = vmatpush1.msra.mxu0 %v163
    %209 = vmatprep.subr.mxu0 %v166
    %210 = vmatpush1.msra.mxu0 %v165
    %211 = vmatprep.subr.mxu0 %v168
    %212 = vmatpush1.msra.mxu0 %v167
    %213 = vmatprep.subr.mxu0 %v170
    %214 = vmatpush1.msra.mxu0 %v169
    %215 = vmatprep.subr.mxu0 %v172
    %216 = vmatpush1.msra.mxu0 %v171
    %217 = vmatprep.subr.mxu0 %v174
    %218 = vmatpush1.msra.mxu0 %v173
    %219 = vmatprep.subr.mxu0 %v176
    %220 = vmatpush1.msra.mxu0 %v175
    %221 = vmatprep.subr.mxu0 %v178
    %222 = vmatpush1.msra.mxu0 %v177
    %223 = vmatprep.subr.mxu0 %v180
    %224 = vmatpush1.msra.mxu0 %v179
    %225 = vmatprep.subr.mxu0 0.0
    %226 = vmatpush1.msra.mxu0 0.0
    %227 = vmatprep.subr.mxu0 0.0
    %228 = vmatpush1.msra.mxu0 0.0
    %229 = vmatprep.subr.mxu0 0.0
    %230 = vmatpush1.msra.mxu0 0.0
    %231 = vmatprep.subr.mxu0 0.0
    %232 = vmatpush1.msra.mxu0 0.0
    %233 = vmatprep.subr.mxu0 0.0
    %234 = vmatpush1.msra.mxu0 0.0
    %235 = vmatprep.subr.mxu0 0.0
    %236 = vmatpush1.msra.mxu0 0.0
    %237 = vmatprep.subr.mxu0 0.0
    %238 = vmatpush1.msra.mxu0 0.0
    %239 = vmatprep.subr.mxu0 0.0
    %240 = vmatpush1.msra.mxu0 0.0
    %241 = vmatprep.subr.mxu0 0.0
    %242 = vmatpush1.msra.mxu0 0.0
    %243 = vmatprep.subr.mxu0 0.0
    %244 = vmatpush1.msra.mxu0 0.0
    %245 = vmatprep.subr.mxu0 0.0
    %246 = vmatpush1.msra.mxu0 0.0
    %247 = vmatprep.subr.mxu0 0.0
    %248 = vmatpush1.msra.mxu0 0.0
    %249 = vmatprep.subr.mxu0 0.0
    %250 = vmatpush1.msra.mxu0 0.0
    %251 = vmatprep.subr.mxu0 0.0
    %252 = vmatpush1.msra.mxu0 0.0
    %253 = vmatprep.subr.mxu0 0.0
    %254 = vmatpush1.msra.mxu0 0.0
    %255 = vmatprep.subr.mxu0 0.0
    %256 = vmatpush1.msra.mxu0 0.0
    %257 = vmatprep.mubr.f32.mxu0 0.0
    %258 = vmatmul.mubr.f32.gmra.mrb[0].mxu0 %v148
    %v259 = vpop.f32.mrb[0].mxu0
    %v260 = vadd.f32 %v186, %v259
    %v261 = vpop.f32.mrb[0].mxu0
    %v262 = vadd.f32 %v190, %v261
    %263 = vdwg.mxu0
    %v264 = vmax.f32 %v260, 0.0
    %v265 = vmax.f32 %v262, 0.0
    %v266 = vpack.c.bf16 %v264, %v264
    %v267 = vpack.c.bf16 %v265, %v265
    %v270 = vunpack.c.l.b16 %v266
    %v271 = vunpack.c.l.b16 %v267
    %v272 = vpack.c.b16 %v271, %v270
    %274 = vst [vmem:[#allocation8] sm:$0xff] %v272
    // Predicated region
    $region34: #{tpu_custom_call.1} parent=1 // pred_check
      _
    $region35: #{tpu_custom_call.1} parent=1 // pred_check_branch
      %276 = sbr.rel (0) target = $region37
    $region36: #{tpu_custom_call.1} parent=1 // pred_region
      %s278 = ssub.s32 128, 128
      %279 = vsyncadd [#allocation4], %s278
      %s281 = sshll.u32 [#allocation8], 4
      %s282 = int_to_ptr.vmem [resolvable:$true] %s281
      %284 = dma.vmem_to_hbm [thread:$0]  %s282, 128, %s5, [#allocation4]
    $region37: #{tpu_custom_call.1} parent=1 // pred_fallthru
      _
    // Predicated region
    $region38: #{tpu_custom_call.1} parent=1 // pred_check
      _
    $region39: #{tpu_custom_call.1} parent=1 // pred_check_branch
      %286 = sbr.rel (0) target = $region41
    $region40: #{tpu_custom_call.1} parent=1 // pred_region
      %287 = dma.done [#allocation4], 128
    $region41: #{tpu_custom_call.1} parent=1 // pred_fallthru
      _
    %288 = vsyncpa [#allocation3], 1
    %289 = vsyncpa [#allocation6], 1
    %290 = vsyncpa [#allocation4], 1

</llo_original>
